<compile_context>
chip_gen: v7x
topology: tpu7x:2x2x1
jax: 0.10.0
libtpu: 0.0.40
codegen_flags: <defaults>
</compile_context>

<pallas_src>
import jax
import jax.numpy as jnp
from jax.experimental import pallas as pl
from jax.experimental.pallas import tpu as pltpu


def _dense_baens_kernel(x_ref, u_ref, b_ref, o_ref):
    """Per-member mat-vec on the VPU/XLU (no 1-row MXU matmuls).

    x_ref: (TN, D1, 1)   u_ref: (TN, D1, D2)   b_ref / o_ref: (TN, B, D2)
    """
    x = x_ref[...]                                   # native dtype
    u = u_ref[...]
    # Lane-broadcast multiply (VPU) in the native dtype + sublane reduction
    # over D1 (XLU) with f32 accumulation -> (TN, D2).
    act = jnp.sum(x * u, axis=1, dtype=jnp.float32)
    # Broadcast across the small ensemble axis B (sublane broadcast), add bias,
    # single wide store.
    out = act[:, None, :] + b_ref[...].astype(jnp.float32)
    o_ref[...] = out.astype(o_ref.dtype)


def _choose_tn(n, d1, d2, itemsize, *, target_tile_bytes=2 << 20, min_steps=4):
    """Pick the N-tile size.

    Memory-bound kernel: ~1-4 MB U tiles already reach ~85%+ of the HBM
    roofline, so cap the tile there (independent of the 64 vs 128 MiB VMEM
    difference across generations) and aim for >= `min_steps` grid steps when N
    permits.  Prefer a TN that divides N exactly (no ragged tail), ideally with
    an even number of grid steps (balanced across v7x's 2 TensorCores).
    """
    per_member = max(1, d1 * d2 * itemsize)
    tn = max(1, min(n, target_tile_bytes // per_member))
    if n >= min_steps:
        tn = min(tn, pl.cdiv(n, min_steps))

    best_even, best_any = None, None
    for cand in range(tn, 0, -1):
        if n % cand == 0:
            if best_any is None:
                best_any = cand
            if (n // cand) % 2 == 0:
                best_even = cand
                break
    # Accept a divisor only if it doesn't shrink the tile by more than 2x.
    for cand in (best_even, best_any):
        if cand is not None and 2 * cand >= tn:
            return cand
    # Fallback: non-divisor TN; Pallas masks the partial last block (no extra
    # HBM traffic, padded rows never written back).
    return tn


def dense_baens_forward(x, U, bias, *, tn=None):
    """x: (N, D1), U: (N, D1, D2), bias: (N, B, D2) -> (N, B, D2) (or (N, D2) if B == 1)."""
    N, D1 = x.shape
    assert U.shape[0] == N and U.shape[1] == D1
    D2 = U.shape[2]
    B = bias.shape[1]
    assert bias.shape == (N, B, D2)

    out_dtype = jnp.result_type(x.dtype, U.dtype)     # matches torch.bmm promotion
    usz = jnp.dtype(U.dtype).itemsize

    if tn is None:
        tn = _choose_tn(N, D1, D2, usz)
    tn = int(max(1, min(tn, N)))
    grid_n = pl.cdiv(N, tn)

    # x as (N, D1, 1): the in-kernel broadcast of x across the D2 lanes is a
    # natural minor-dim broadcast, and the leading dim carries no (8,128)
    # constraint (last two block dims equal the full array dims).
    x3 = x[:, :, None]

    flops = 2 * N * D1 * D2 + N * B * D2
    bytes_accessed = int(
        usz * N * D1 * D2
        + jnp.dtype(bias.dtype).itemsize * N * B * D2
        + jnp.dtype(out_dtype).itemsize * N * B * D2
        + jnp.dtype(x.dtype).itemsize * N * D1
    )

    out = pl.pallas_call(
        _dense_baens_kernel,
        out_shape=jax.ShapeDtypeStruct((N, B, D2), out_dtype),
        grid=(grid_n,),
        in_specs=[
            pl.BlockSpec((tn, D1, 1), lambda n: (n, 0, 0)),
            pl.BlockSpec((tn, D1, D2), lambda n: (n, 0, 0)),
            pl.BlockSpec((tn, B, D2), lambda n: (n, 0, 0)),
        ],
        out_specs=pl.BlockSpec((tn, B, D2), lambda n: (n, 0, 0)),
        compiler_params=pltpu.CompilerParams(
            dimension_semantics=("parallel",),
            vmem_limit_bytes=32 * 1024 * 1024,   # ample for ~2 MB tiles, safe on v5e..v7x
        ),
        cost_estimate=pl.CostEstimate(
            flops=flops, transcendentals=0, bytes_accessed=bytes_accessed),
    )(x3, U, bias)

    if B == 1:
        out = out.reshape(N, D2)                 # matches torch .squeeze(1)
    return out


if __name__ == "__main__":
    # Small shapes consistent with the module: N ensemble members, B "batch"
    # rows, D1 input features, D2 output features.  N=20 exercises the N-tiling
    # (TN=5 -> 4 balanced grid steps, no padding anywhere); D2=64 exercises a
    # sub-128 lane extent handled without padding U.
    N, B, D1, D2 = 20, 3, 32, 64

    key = jax.random.PRNGKey(0)
    kx, ku, kb = jax.random.split(key, 3)

    # Deterministic parameter init mirroring torch.normal(0, 0.01, shape)
    U = 0.01 * jax.random.normal(ku, (N, D1, D2), dtype=jnp.float32)
    bias = 0.01 * jax.random.normal(kb, (N, B, D2), dtype=jnp.float32)
    x = jax.random.normal(kx, (N, D1), dtype=jnp.float32)

    out = dense_baens_forward(x, U, bias)
    out = jax.block_until_ready(out)

    # Reference (plain JAX) check of the bmm + broadcast-add semantics.
    ref = jnp.einsum("nk,nkd->nd", x, U)[:, None, :] + bias  # (N, B, D2)
    assert out.shape == ref.shape, (out.shape, ref.shape)
    assert jnp.allclose(out, ref, atol=1e-5, rtol=1e-5)

    print("KERNEL_OK")
</pallas_src>

<mosaic_0001>
module attributes {stable_mosaic.version = 11 : i64} {
  func.func @_dense_baens_kernel(%arg0: i32, %arg1: memref<5x32x1xf32, #tpu.memory_space<vmem>>, %arg2: memref<5x32x64xf32, #tpu.memory_space<vmem>>, %arg3: memref<5x3x64xf32, #tpu.memory_space<vmem>>, %arg4: memref<5x3x64xf32, #tpu.memory_space<vmem>>) attributes {dimension_semantics = [#tpu.dimension_semantics<parallel>], iteration_bounds = array<i64: 4>, scalar_prefetch = 0 : i64, scratch_operands = 0 : i64, tpu.core_type = #tpu.core_type<tc>, window_params = [{transform_indices = @transform_0, window_bounds = array<i64: 5, 32, 1>}, {transform_indices = @transform_1, window_bounds = array<i64: 5, 32, 64>}, {transform_indices = @transform_2, window_bounds = array<i64: 5, 3, 64>}, {transform_indices = @transform_3, window_bounds = array<i64: 5, 3, 64>}]} {
    %c0 = arith.constant 0 : index
    %c0_0 = arith.constant 0 : index
    %c0_1 = arith.constant 0 : index
    %0 = vector.load %arg1[%c0, %c0_0, %c0_1] : memref<5x32x1xf32, #tpu.memory_space<vmem>>, vector<5x32x1xf32>
    %c0_2 = arith.constant 0 : index
    %c0_3 = arith.constant 0 : index
    %c0_4 = arith.constant 0 : index
    %1 = vector.load %arg2[%c0_2, %c0_3, %c0_4] : memref<5x32x64xf32, #tpu.memory_space<vmem>>, vector<5x32x64xf32>
    %2 = vector.broadcast %0 : vector<5x32x1xf32> to vector<5x32x64xf32>
    %3 = arith.mulf %2, %1 : vector<5x32x64xf32>
    %cst = arith.constant dense<0.000000e+00> : vector<5x64xf32>
    %4 = vector.multi_reduction <add>, %3, %cst [1] : vector<5x32x64xf32> to vector<5x64xf32>
    %5 = vector.shape_cast %4 : vector<5x64xf32> to vector<5x1x64xf32>
    %c0_5 = arith.constant 0 : index
    %c0_6 = arith.constant 0 : index
    %c0_7 = arith.constant 0 : index
    %6 = vector.load %arg3[%c0_5, %c0_6, %c0_7] : memref<5x3x64xf32, #tpu.memory_space<vmem>>, vector<5x3x64xf32>
    %7 = vector.broadcast %5 : vector<5x1x64xf32> to vector<5x3x64xf32>
    %8 = arith.addf %7, %6 : vector<5x3x64xf32>
    %c0_8 = arith.constant 0 : index
    %c0_9 = arith.constant 0 : index
    %c0_10 = arith.constant 0 : index
    %9 = vector.load %arg4[%c0_8, %c0_9, %c0_10] : memref<5x3x64xf32, #tpu.memory_space<vmem>>, vector<5x3x64xf32>
    tpu.vector_store %arg4[%c0_8, %c0_9, %c0_10], %8 {strides = array<i32>} : memref<5x3x64xf32, #tpu.memory_space<vmem>>, vector<5x3x64xf32>,
    return
  }
  func.func @transform_0(%arg0: i32) -> (i32, i32, i32) {
    %c0_i32 = arith.constant 0 : i32
    %c0_i32_0 = arith.constant 0 : i32
    %c0_i32_1 = arith.constant 0 : i32
    return %arg0, %c0_i32, %c0_i32_0 : i32, i32, i32
  }
  func.func @transform_1(%arg0: i32) -> (i32, i32, i32) {
    %c0_i32 = arith.constant 0 : i32
    %c0_i32_0 = arith.constant 0 : i32
    %c0_i32_1 = arith.constant 0 : i32
    return %arg0, %c0_i32, %c0_i32_0 : i32, i32, i32
  }
  func.func @transform_2(%arg0: i32) -> (i32, i32, i32) {
    %c0_i32 = arith.constant 0 : i32
    %c0_i32_0 = arith.constant 0 : i32
    %c0_i32_1 = arith.constant 0 : i32
    return %arg0, %c0_i32, %c0_i32_0 : i32, i32, i32
  }
  func.func @transform_3(%arg0: i32) -> (i32, i32, i32) {
    %c0_i32 = arith.constant 0 : i32
    %c0_i32_0 = arith.constant 0 : i32
    %c0_i32_1 = arith.constant 0 : i32
    return %arg0, %c0_i32, %c0_i32_0 : i32, i32, i32
  }
}

</mosaic_0001>

<llo_original>
// kernel: tpu_custom_call.1
$region0: #{tpu_custom_call.1}
  #allocation0 [shape = 'u32[]', space=smem, size = 0x4, offset = 0x4, fixed_abs, tag = 'smem constant byte address 0x4 - core index']
  #allocation1 [shape = 'u32[144,128]{1,0:T(1,128)}', space=vmem, size = 0x12000, scoped, tag = 'internal scratch']
  %s0 = inlined_call_operand.vmem [shape: f32[20,32,1], index: 0, kind: input, shape index: {}]
  %s1 = inlined_call_operand.vmem [shape: f32[20,32,64], index: 1, kind: input, shape index: {}]
  %s2 = inlined_call_operand.vmem [shape: f32[20,3,64], index: 2, kind: input, shape index: {}]
  %s3 = inlined_call_operand.vmem [shape: f32[20,3,64], index: 3, kind: output, shape index: {}]
  %s4 = sld [smem:[#allocation0]]
  $region45: #{tpu_custom_call.1} parent=0
    _
  %s6 = ssub.s32 1, %s4
  %s7 = scalar_select 0, %s6, %s4
  loop: start=0, step=1, limit=6
  $region2: #{tpu_custom_call.1} parent=0 // loop_pre_header
    _
  $region3: #{tpu_custom_call.1} parent=0 // loop_header
    %s9 = sphi 0, %s13
    %p10 = scmp.ge.s32.totalorder %s9, 6
    %s19 = sphi 0, %s21
    %s22 = sphi 0, %s19
    %s23 = sphi 0, %s22
    %s39 = sphi 0, %s23
    %s45 = sphi 0, %s47
    %s48 = sphi 0, %s45
    %s49 = sphi 0, %s48
    %s65 = sphi 0, %s49
    %s71 = sphi 0, %s73
    %s74 = sphi 0, %s71
    %s75 = sphi 0, %s74
    %s91 = sphi 0, %s75
    %s97 = sphi 0, %s99
    %s100 = sphi 0, %s97
    %s101 = sphi 0, %s100
    %s117 = sphi 0, %s101
  $region4: #{tpu_custom_call.1} parent=0 // loop_header_branch
    %12 = sbr.rel (%p10) target = $region8
  $region5: #{tpu_custom_call.1} parent=0 // loop_body
    %s14 = ssub.s32 %s9, 1
    %s15 = ssub.s32 %s9, 2
    %s16 = sadd.s32 %s9, 1
    %s17 = ssub.s32 %s9, %s16
    %p18 = scmp.eq.s32.totalorder %s17, 0
    %s20 = sadd.s32 %s19, 1
    %s21 = scalar_select %p18, %s19, %s20
    %p24 = pneg %p18
    %p25 = scmp.eq.s32.totalorder %s9, 3
    %p26 = por %p24, %p25
    %p27 = scmp.ne.s32.totalorder %s19, %s22
    %p28 = scmp.eq.s32.totalorder %s9, 0
    %p29 = por %p27, %p28
    %p30 = scmp.ne.s32.totalorder %s19, %s22
    %p31 = scmp.eq.s32.totalorder %s14, 3
    %p32 = por %p30, %p31
    %p33 = scmp.ne.s32.totalorder %s22, %s23
    %p34 = scmp.eq.s32.totalorder %s14, 0
    %p35 = por %p33, %p34
    %p36 = scmp.ne.s32.totalorder %s22, %s23
    %p37 = scmp.eq.s32.totalorder %s15, 3
    %p38 = por %p36, %p37
    %p40 = scmp.ne.s32.totalorder %s23, %s39
    %p41 = scmp.eq.s32.totalorder %s15, 0
    %p42 = por %p40, %p41
    %s43 = ssub.s32 %s9, %s16
    %p44 = scmp.eq.s32.totalorder %s43, 0
    %s46 = sadd.s32 %s45, 1
    %s47 = scalar_select %p44, %s45, %s46
    %p50 = pneg %p44
    %p51 = scmp.eq.s32.totalorder %s9, 3
    %p52 = por %p50, %p51
    %p53 = scmp.ne.s32.totalorder %s45, %s48
    %p54 = scmp.eq.s32.totalorder %s9, 0
    %p55 = por %p53, %p54
    %p56 = scmp.ne.s32.totalorder %s45, %s48
    %p57 = scmp.eq.s32.totalorder %s14, 3
    %p58 = por %p56, %p57
    %p59 = scmp.ne.s32.totalorder %s48, %s49
    %p60 = scmp.eq.s32.totalorder %s14, 0
    %p61 = por %p59, %p60
    %p62 = scmp.ne.s32.totalorder %s48, %s49
    %p63 = scmp.eq.s32.totalorder %s15, 3
    %p64 = por %p62, %p63
    %p66 = scmp.ne.s32.totalorder %s49, %s65
    %p67 = scmp.eq.s32.totalorder %s15, 0
    %p68 = por %p66, %p67
    %s69 = ssub.s32 %s9, %s16
    %p70 = scmp.eq.s32.totalorder %s69, 0
    %s72 = sadd.s32 %s71, 1
    %s73 = scalar_select %p70, %s71, %s72
    %p76 = pneg %p70
    %p77 = scmp.eq.s32.totalorder %s9, 3
    %p78 = por %p76, %p77
    %p79 = scmp.ne.s32.totalorder %s71, %s74
    %p80 = scmp.eq.s32.totalorder %s9, 0
    %p81 = por %p79, %p80
    %p82 = scmp.ne.s32.totalorder %s71, %s74
    %p83 = scmp.eq.s32.totalorder %s14, 3
    %p84 = por %p82, %p83
    %p85 = scmp.ne.s32.totalorder %s74, %s75
    %p86 = scmp.eq.s32.totalorder %s14, 0
    %p87 = por %p85, %p86
    %p88 = scmp.ne.s32.totalorder %s74, %s75
    %p89 = scmp.eq.s32.totalorder %s15, 3
    %p90 = por %p88, %p89
    %p92 = scmp.ne.s32.totalorder %s75, %s91
    %p93 = scmp.eq.s32.totalorder %s15, 0
    %p94 = por %p92, %p93
    %s95 = ssub.s32 %s9, %s16
    %p96 = scmp.eq.s32.totalorder %s95, 0
    %s98 = sadd.s32 %s97, 1
    %s99 = scalar_select %p96, %s97, %s98
    %p102 = pneg %p96
    %p103 = scmp.eq.s32.totalorder %s9, 3
    %p104 = por %p102, %p103
    %p105 = scmp.ne.s32.totalorder %s97, %s100
    %p106 = scmp.eq.s32.totalorder %s9, 0
    %p107 = por %p105, %p106
    %p108 = scmp.ne.s32.totalorder %s97, %s100
    %p109 = scmp.eq.s32.totalorder %s14, 3
    %p110 = por %p108, %p109
    %p111 = scmp.ne.s32.totalorder %s100, %s101
    %p112 = scmp.eq.s32.totalorder %s14, 0
    %p113 = por %p111, %p112
    %p114 = scmp.ne.s32.totalorder %s100, %s101
    %p115 = scmp.eq.s32.totalorder %s15, 3
    %p116 = por %p114, %p115
    %p118 = scmp.ne.s32.totalorder %s101, %s117
    %p119 = scmp.eq.s32.totalorder %s15, 0
    %p120 = por %p118, %p119
    %p121 = scmp.le.s32.totalorder 1, %s9
    %p122 = scmp.lt.s32.totalorder %s9, 5
    %p123 = pnand %p121, %p122
    %p124 = pneg %p123
    // Predicated region
    $region9: #{tpu_custom_call.1} parent=5 // pred_check
      _
    $region10: #{tpu_custom_call.1} parent=5 // pred_check_branch
      %126 = sbr.rel (%p123) target = $region12
    $region11: #{tpu_custom_call.1} parent=5 // pred_region
      %s127 = ssub.s32 %s9, 1
    $region12: #{tpu_custom_call.1} parent=5 // pred_fallthru
      _
    %p128 = scmp.lt.s32.totalorder %s9, 4
    // Predicated region
    $region13: #{tpu_custom_call.1} parent=5 // pred_check
      %p129 = pneg %p128
    $region14: #{tpu_custom_call.1} parent=5 // pred_check_branch
      %131 = sbr.rel (%p129) target = $region16
    $region15: #{tpu_custom_call.1} parent=5 // pred_region
      // Predicated region
      $region17: #{tpu_custom_call.1} parent=15 // pred_check
        %p132 = pneg %p29
      $region18: #{tpu_custom_call.1} parent=15 // pred_check_branch
        %134 = sbr.rel (%p132) target = $region20
      $region19: #{tpu_custom_call.1} parent=15 // pred_region
        %s135 = smul.u32 5, %s9
        %p136 = scmp.lt.s32.totalorder %s135, 19
        %s137 = scalar_select %p136, %s135, 19
        %s138 = smul.addr %s137, 4
        %s139 = smul.addr %s138, 8
        %s140 = scalar_lea.vmem %s0, %s139
        %s141 = smul.u32 5, %s9
      $region20: #{tpu_custom_call.1} parent=15 // pred_fallthru
        _
      // Predicated region
      $region21: #{tpu_custom_call.1} parent=15 // pred_check
        %p142 = pneg %p55
      $region22: #{tpu_custom_call.1} parent=15 // pred_check_branch
        %144 = sbr.rel (%p142) target = $region24
      $region23: #{tpu_custom_call.1} parent=15 // pred_region
        %s145 = smul.u32 5, %s9
        %p146 = scmp.lt.s32.totalorder %s145, 19
        %s147 = scalar_select %p146, %s145, 19
        %s148 = smul.addr %s147, 4
        %s149 = smul.addr %s148, 8
        %s150 = scalar_lea.vmem %s1, %s149
        %s151 = smul.u32 5, %s9
      $region24: #{tpu_custom_call.1} parent=15 // pred_fallthru
        _
      // Predicated region
      $region25: #{tpu_custom_call.1} parent=15 // pred_check
        %p152 = pneg %p81
      $region26: #{tpu_custom_call.1} parent=15 // pred_check_branch
        %154 = sbr.rel (%p152) target = $region28
      $region27: #{tpu_custom_call.1} parent=15 // pred_region
        %s155 = smul.u32 5, %s9
        %p156 = scmp.lt.s32.totalorder %s155, 19
        %s157 = scalar_select %p156, %s155, 19
        %s158 = smul.addr %s157, 4
        %s159 = scalar_lea.vmem %s2, %s158
        %s160 = smul.u32 5, %s9
      $region28: #{tpu_custom_call.1} parent=15 // pred_fallthru
        _
    $region16: #{tpu_custom_call.1} parent=5 // pred_fallthru
      _
    %p161 = scmp.le.s32.totalorder 1, %s9
    %p162 = scmp.lt.s32.totalorder %s9, 5
    %p163 = pnand %p161, %p162
    %p164 = pneg %p163
    // Predicated region
    $region29: #{tpu_custom_call.1} parent=5 // pred_check
      _
    $region30: #{tpu_custom_call.1} parent=5 // pred_check_branch
      %166 = sbr.rel (%p163) target = $region32
    $region31: #{tpu_custom_call.1} parent=5 // pred_region
      %s167 = ssub.s32 %s9, 1
      %s168 = smul.u32 5, %s14
      %p169 = scmp.lt.s32.totalorder %s168, 19
      %s170 = scalar_select %p169, %s168, 19
      %s171 = smul.addr %s170, 4
      %s172 = smul.addr %s171, 8
      %s173 = scalar_lea.vmem %s0, %s172
      %p174 = pneg %p35
      %p175 = pneg %p32
      %s176 = smul.u32 5, %s14
      %p177 = scmp.lt.s32.totalorder %s176, 19
      %s178 = scalar_select %p177, %s176, 19
      %s179 = smul.addr %s178, 4
      %s180 = smul.addr %s179, 8
      %s181 = scalar_lea.vmem %s1, %s180
      %p182 = pneg %p61
      %p183 = pneg %p58
      %s184 = smul.u32 5, %s14
      %p185 = scmp.lt.s32.totalorder %s184, 19
      %s186 = scalar_select %p185, %s184, 19
      %s187 = smul.addr %s186, 4
      %s188 = scalar_lea.vmem %s2, %s187
      %p189 = pneg %p87
      %p190 = pneg %p84
      %p191 = pneg %p113
      %p192 = pneg %p110
      %s193 = smul.u32 5, %s14
      %p194 = scmp.lt.s32.totalorder %s193, 19
      %s195 = scalar_select %p194, %s193, 19
      %s196 = smul.addr %s195, 4
      %s197 = scalar_lea.vmem %s3, %s196
      %s198 = smul.u32 5, %s14
      %p199 = scmp.lt.s32.totalorder %s198, 19
      %s200 = scalar_select %p199, %s198, 19
      %s201 = smul.addr %s200, 4
      %s202 = smul.addr %s201, 8
      %s203 = scalar_lea.vmem %s0, %s202
      %s204 = smul.u32 5, %s14
      %s205 = smul.u32 5, %s14
      %p206 = scmp.lt.s32.totalorder %s205, 19
      %s207 = scalar_select %p206, %s205, 19
      %s208 = smul.addr %s207, 4
      %s209 = smul.addr %s208, 8
      %s210 = scalar_lea.vmem %s1, %s209
      %s211 = smul.u32 5, %s14
      %s212 = smul.u32 5, %s14
      %p213 = scmp.lt.s32.totalorder %s212, 19
      %s214 = scalar_select %p213, %s212, 19
      %s215 = smul.addr %s214, 4
      %s216 = scalar_lea.vmem %s2, %s215
      %s217 = smul.u32 5, %s14
      %s218 = smul.u32 5, %s14
      %p219 = scmp.lt.s32.totalorder %s218, 19
      %s220 = scalar_select %p219, %s218, 19
      %s221 = smul.addr %s220, 4
      %s222 = scalar_lea.vmem %s3, %s221
      %s223 = smul.u32 5, %s14
      %v224 = vld [vmem:[%s203] sm:$0xff]
      %v225 = vld [vmem:[%s203 + $0x8] sm:$0xff]
      %v226 = vld [vmem:[%s203 + $0x10] sm:$0xff]
      %v227 = vld [vmem:[%s203 + $0x18] sm:$0xff]
      %v228 = vld [vmem:[%s203 + $0x20] sm:$0xff]
      %v229 = vld [vmem:[%s203 + $0x28] sm:$0xff]
      %v230 = vld [vmem:[%s203 + $0x30] sm:$0xff]
      %v231 = vld [vmem:[%s203 + $0x38] sm:$0xff]
      %v232 = vld [vmem:[%s203 + $0x40] sm:$0xff]
      %v233 = vld [vmem:[%s203 + $0x48] sm:$0xff]
      %v234 = vld [vmem:[%s203 + $0x50] sm:$0xff]
      %v235 = vld [vmem:[%s203 + $0x58] sm:$0xff]
      %v236 = vld [vmem:[%s203 + $0x60] sm:$0xff]
      %v237 = vld [vmem:[%s203 + $0x68] sm:$0xff]
      %v238 = vld [vmem:[%s203 + $0x70] sm:$0xff]
      %v239 = vld [vmem:[%s203 + $0x78] sm:$0xff]
      %v240 = vld [vmem:[%s203 + $0x80] sm:$0xff]
      %v241 = vld [vmem:[%s203 + $0x88] sm:$0xff]
      %v242 = vld [vmem:[%s203 + $0x90] sm:$0xff]
      %v243 = vld [vmem:[%s203 + $0x98] sm:$0xff]
      %v244 = vld [vmem:[%s210] sm:$0xff]
      %v245 = vld [vmem:[%s210 + $0x8] sm:$0xff]
      %v246 = vld [vmem:[%s210 + $0x10] sm:$0xff]
      %v247 = vld [vmem:[%s210 + $0x18] sm:$0xff]
      %v248 = vld [vmem:[%s210 + $0x20] sm:$0xff]
      %v249 = vld [vmem:[%s210 + $0x28] sm:$0xff]
      %v250 = vld [vmem:[%s210 + $0x30] sm:$0xff]
      %v251 = vld [vmem:[%s210 + $0x38] sm:$0xff]
      %v252 = vld [vmem:[%s210 + $0x40] sm:$0xff]
      %v253 = vld [vmem:[%s210 + $0x48] sm:$0xff]
      %v254 = vld [vmem:[%s210 + $0x50] sm:$0xff]
      %v255 = vld [vmem:[%s210 + $0x58] sm:$0xff]
      %v256 = vld [vmem:[%s210 + $0x60] sm:$0xff]
      %v257 = vld [vmem:[%s210 + $0x68] sm:$0xff]
      %v258 = vld [vmem:[%s210 + $0x70] sm:$0xff]
      %v259 = vld [vmem:[%s210 + $0x78] sm:$0xff]
      %v260 = vld [vmem:[%s210 + $0x80] sm:$0xff]
      %v261 = vld [vmem:[%s210 + $0x88] sm:$0xff]
      %v262 = vld [vmem:[%s210 + $0x90] sm:$0xff]
      %v263 = vld [vmem:[%s210 + $0x98] sm:$0xff]
      %265 = vset.pattern.permute.xlu0 0
      %266 = vperm.xlu0 %265, %v224
      %v267 = vpop.permute.xlu0 %266
      %270 = vset.pattern.permute.xlu0 0
      %271 = vperm.xlu0 %270, %v225
      %v272 = vpop.permute.xlu0 %271
      %275 = vset.pattern.permute.xlu0 0
      %276 = vperm.xlu0 %275, %v226
      %v277 = vpop.permute.xlu0 %276
      %280 = vset.pattern.permute.xlu0 0
      %281 = vperm.xlu0 %280, %v227
      %v282 = vpop.permute.xlu0 %281
      %285 = vset.pattern.permute.xlu0 0
      %286 = vperm.xlu0 %285, %v228
      %v287 = vpop.permute.xlu0 %286
      %290 = vset.pattern.permute.xlu0 0
      %291 = vperm.xlu0 %290, %v229
      %v292 = vpop.permute.xlu0 %291
      %295 = vset.pattern.permute.xlu0 0
      %296 = vperm.xlu0 %295, %v230
      %v297 = vpop.permute.xlu0 %296
      %300 = vset.pattern.permute.xlu0 0
      %301 = vperm.xlu0 %300, %v231
      %v302 = vpop.permute.xlu0 %301
      %305 = vset.pattern.permute.xlu0 0
      %306 = vperm.xlu0 %305, %v232
      %v307 = vpop.permute.xlu0 %306
      %310 = vset.pattern.permute.xlu0 0
      %311 = vperm.xlu0 %310, %v233
      %v312 = vpop.permute.xlu0 %311
      %315 = vset.pattern.permute.xlu0 0
      %316 = vperm.xlu0 %315, %v234
      %v317 = vpop.permute.xlu0 %316
      %320 = vset.pattern.permute.xlu0 0
      %321 = vperm.xlu0 %320, %v235
      %v322 = vpop.permute.xlu0 %321
      %325 = vset.pattern.permute.xlu0 0
      %326 = vperm.xlu0 %325, %v236
      %v327 = vpop.permute.xlu0 %326
      %330 = vset.pattern.permute.xlu0 0
      %331 = vperm.xlu0 %330, %v237
      %v332 = vpop.permute.xlu0 %331
      %335 = vset.pattern.permute.xlu0 0
      %336 = vperm.xlu0 %335, %v238
      %v337 = vpop.permute.xlu0 %336
      %340 = vset.pattern.permute.xlu0 0
      %341 = vperm.xlu0 %340, %v239
      %v342 = vpop.permute.xlu0 %341
      %345 = vset.pattern.permute.xlu0 0
      %346 = vperm.xlu0 %345, %v240
      %v347 = vpop.permute.xlu0 %346
      %350 = vset.pattern.permute.xlu0 0
      %351 = vperm.xlu0 %350, %v241
      %v352 = vpop.permute.xlu0 %351
      %355 = vset.pattern.permute.xlu0 0
      %356 = vperm.xlu0 %355, %v242
      %v357 = vpop.permute.xlu0 %356
      %360 = vset.pattern.permute.xlu0 0
      %361 = vperm.xlu0 %360, %v243
      %v362 = vpop.permute.xlu0 %361
      %v364 = vmul.f32 %v267, %v244
      %v365 = vmul.f32 %v272, %v245
      %v366 = vmul.f32 %v277, %v246
      %v367 = vmul.f32 %v282, %v247
      %v368 = vmul.f32 %v287, %v248
      %v369 = vmul.f32 %v292, %v249
      %v370 = vmul.f32 %v297, %v250
      %v371 = vmul.f32 %v302, %v251
      %v372 = vmul.f32 %v307, %v252
      %v373 = vmul.f32 %v312, %v253
      %v374 = vmul.f32 %v317, %v254
      %v375 = vmul.f32 %v322, %v255
      %v376 = vmul.f32 %v327, %v256
      %v377 = vmul.f32 %v332, %v257
      %v378 = vmul.f32 %v337, %v258
      %v379 = vmul.f32 %v342, %v259
      %v380 = vmul.f32 %v347, %v260
      %v381 = vmul.f32 %v352, %v261
      %v382 = vmul.f32 %v357, %v262
      %v383 = vmul.f32 %v362, %v263
      %vm384 = vcmask 523264
      %v385 = vsel %vm384, %v364, 0.0
      %v386 = vsel %vm384, %v365, 0.0
      %v387 = vadd.f32 %v385, %v386
      %v388 = vsel %vm384, %v366, 0.0
      %v389 = vadd.f32 %v387, %v388
      %v390 = vsel %vm384, %v367, 0.0
      %v391 = vadd.f32 %v389, %v390
      %v392 = vrot.slane %v391, 4
      %v393 = vadd.f32 %v391, %v392
      %v394 = vrot.slane %v393, 2
      %v395 = vadd.f32 %v393, %v394
      %v396 = vrot.slane %v395, 1
      %v397 = vadd.f32 %v395, %v396
      %v398 = vsel %vm384, %v368, 0.0
      %v399 = vsel %vm384, %v369, 0.0
      %v400 = vadd.f32 %v398, %v399
      %v401 = vsel %vm384, %v370, 0.0
      %v402 = vadd.f32 %v400, %v401
      %v403 = vsel %vm384, %v371, 0.0
      %v404 = vadd.f32 %v402, %v403
      %v405 = vrot.slane %v404, 4
      %v406 = vadd.f32 %v404, %v405
      %v407 = vrot.slane %v406, 2
      %v408 = vadd.f32 %v406, %v407
      %v409 = vrot.slane %v408, 1
      %v410 = vadd.f32 %v408, %v409
      %v411 = vsel %vm384, %v372, 0.0
      %v412 = vsel %vm384, %v373, 0.0
      %v413 = vadd.f32 %v411, %v412
      %v414 = vsel %vm384, %v374, 0.0
      %v415 = vadd.f32 %v413, %v414
      %v416 = vsel %vm384, %v375, 0.0
      %v417 = vadd.f32 %v415, %v416
      %v418 = vrot.slane %v417, 4
      %v419 = vadd.f32 %v417, %v418
      %v420 = vrot.slane %v419, 2
      %v421 = vadd.f32 %v419, %v420
      %v422 = vrot.slane %v421, 1
      %v423 = vadd.f32 %v421, %v422
      %v424 = vsel %vm384, %v376, 0.0
      %v425 = vsel %vm384, %v377, 0.0
      %v426 = vadd.f32 %v424, %v425
      %v427 = vsel %vm384, %v378, 0.0
      %v428 = vadd.f32 %v426, %v427
      %v429 = vsel %vm384, %v379, 0.0
      %v430 = vadd.f32 %v428, %v429
      %v431 = vrot.slane %v430, 4
      %v432 = vadd.f32 %v430, %v431
      %v433 = vrot.slane %v432, 2
      %v434 = vadd.f32 %v432, %v433
      %v435 = vrot.slane %v434, 1
      %v436 = vadd.f32 %v434, %v435
      %v437 = vsel %vm384, %v380, 0.0
      %v438 = vsel %vm384, %v381, 0.0
      %v439 = vadd.f32 %v437, %v438
      %v440 = vsel %vm384, %v382, 0.0
      %v441 = vadd.f32 %v439, %v440
      %v442 = vsel %vm384, %v383, 0.0
      %v443 = vadd.f32 %v441, %v442
      %v444 = vrot.slane %v443, 4
      %v445 = vadd.f32 %v443, %v444
      %v446 = vrot.slane %v445, 2
      %v447 = vadd.f32 %v445, %v446
      %v448 = vrot.slane %v447, 1
      %v449 = vadd.f32 %v447, %v448
      %v450 = vld [vmem:[%s216] sm:$0x7]
      %v451 = vld [vmem:[%s216 + $0x4] sm:$0x7]
      %v452 = vld [vmem:[%s216 + $0x8] sm:$0x7]
      %v453 = vld [vmem:[%s216 + $0xc] sm:$0x7]
      %v454 = vld [vmem:[%s216 + $0x10] sm:$0x7]
      %v455 = vadd.f32 %v397, %v450
      %v456 = vadd.f32 %v410, %v451
      %v457 = vadd.f32 %v423, %v452
      %v458 = vadd.f32 %v436, %v453
      %v459 = vadd.f32 %v449, %v454
      %vm460 = vcmask 518144
      %461 = vst.msk [vmem:[%s222] sm:$0x7] %vm460, %v455
      %462 = vst.msk [vmem:[%s222 + $0x4] sm:$0x7] %vm460, %v456
      %463 = vst.msk [vmem:[%s222 + $0x8] sm:$0x7] %vm460, %v457
      %464 = vst.msk [vmem:[%s222 + $0xc] sm:$0x7] %vm460, %v458
      %465 = vst.msk [vmem:[%s222 + $0x10] sm:$0x7] %vm460, %v459
      %s466 = smul.u32 5, %s14
      %p467 = scmp.lt.s32.totalorder %s466, 19
      %s468 = scalar_select %p467, %s466, 19
      %s469 = smul.addr %s468, 4
      %s470 = scalar_lea.vmem %s3, %s469
      // Predicated region
      $region33: #{tpu_custom_call.1} parent=31 // pred_check
        %p471 = pneg %p110
      $region34: #{tpu_custom_call.1} parent=31 // pred_check_branch
        %473 = sbr.rel (%p471) target = $region36
      $region35: #{tpu_custom_call.1} parent=31 // pred_region
        %s474 = smul.u32 5, %s14
      $region36: #{tpu_custom_call.1} parent=31 // pred_fallthru
        _
    $region32: #{tpu_custom_call.1} parent=5 // pred_fallthru
      _
    %p475 = scmp.le.s32.totalorder 2, %s9
    // Predicated region
    $region37: #{tpu_custom_call.1} parent=5 // pred_check
      %p476 = pneg %p475
    $region38: #{tpu_custom_call.1} parent=5 // pred_check_branch
      %478 = sbr.rel (%p476) target = $region40
    $region39: #{tpu_custom_call.1} parent=5 // pred_region
      %s479 = ssub.s32 %s9, 2
      // Predicated region
      $region41: #{tpu_custom_call.1} parent=39 // pred_check
        %p480 = pneg %p116
      $region42: #{tpu_custom_call.1} parent=39 // pred_check_branch
        %482 = sbr.rel (%p480) target = $region44
      $region43: #{tpu_custom_call.1} parent=39 // pred_region
        %s483 = smul.u32 5, %s15
        %p484 = scmp.lt.s32.totalorder %s483, 19
        %s485 = scalar_select %p484, %s483, 19
        %s486 = smul.addr %s485, 4
        %s487 = scalar_lea.vmem %s3, %s486
      $region44: #{tpu_custom_call.1} parent=39 // pred_fallthru
        _
    $region40: #{tpu_custom_call.1} parent=5 // pred_fallthru
      _
  $region6: #{tpu_custom_call.1} parent=0 // loop_footer
    %s13 = sadd.s32 1, %s9
  $region7: #{tpu_custom_call.1} parent=0 // loop_footer_branch
    %8 = sbr.rel target = $region3
  $region8: #{tpu_custom_call.1} parent=0 // loop_exit
    _

</llo_original>
